<compile_context>
chip_gen: v6e
topology: v6e:2x2x1
jax: 0.10.0
libtpu: 0.0.40
codegen_flags: <defaults>
</compile_context>

<pallas_src>
import jax
import jax.numpy as jnp
from jax.experimental import pallas as pl
from jax.experimental.pallas import tpu as pltpu


def _awl_kernel(l_ref, p_ref, out_ref):
    """l_ref, p_ref: (1, num) f32 whole arrays in VMEM. out_ref: (1, 1) f32 SMEM."""
    l = l_ref[...]
    p = p_ref[...]
    p2 = p * p
    # 0.5 / p^2 * loss  +  log(1 + p^2)
    term = 0.5 * l * pl.reciprocal(p2, approx=False) + jnp.log1p(p2)
    out_ref[0, 0] = jnp.sum(term)


def _awl_forward(losses: jnp.ndarray, params: jnp.ndarray) -> jnp.ndarray:
    num = losses.shape[0]
    if params.shape != (num,):
        raise ValueError(f"params shape {params.shape} != losses shape {losses.shape}")

    l2d = losses.astype(jnp.float32).reshape(1, num)
    p2d = params.astype(jnp.float32).reshape(1, num)

    out = pl.pallas_call(
        _awl_kernel,
        out_shape=jax.ShapeDtypeStruct((1, 1), jnp.float32),
        in_specs=[
            pl.BlockSpec(memory_space=pltpu.VMEM),   # whole-array, no pipelining
            pl.BlockSpec(memory_space=pltpu.VMEM),
        ],
        out_specs=pl.BlockSpec(memory_space=pltpu.SMEM),
        cost_estimate=pl.CostEstimate(
            flops=6 * num,
            transcendentals=2 * num,
            bytes_accessed=2 * 4 * num + 4,
        ),
    )(l2d, p2d)
    return out[0, 0]


@jax.custom_vjp
def automatic_weighted_loss(losses: jnp.ndarray, params: jnp.ndarray) -> jnp.ndarray:
    """losses, params: shape (num,) float32. Returns scalar float32."""
    return _awl_forward(losses, params)


def _awl_fwd(losses, params):
    return _awl_forward(losses, params), (losses.astype(jnp.float32),
                                          params.astype(jnp.float32))


def _awl_bwd(res, g):
    losses, params = res
    p2 = params * params
    d_losses = g * (0.5 / p2)
    d_params = g * (-losses / (params * p2) + 2.0 * params / (1.0 + p2))
    return d_losses, d_params


automatic_weighted_loss.defvjp(_awl_fwd, _awl_bwd)

# Jit the public entry so the (free) reshapes fuse into one executable.
automatic_weighted_loss = jax.jit(automatic_weighted_loss)


def _reference(losses, params):
    p2 = params.astype(jnp.float32) ** 2
    return jnp.sum(0.5 / p2 * losses.astype(jnp.float32) + jnp.log(1.0 + p2))


if __name__ == "__main__":
    num = 2  # AutomaticWeightedLoss(num=2)

    # Deterministic parameter init: torch.ones(num)
    params = jnp.ones((num,), jnp.float32)

    # Deterministic example task losses (scalars), small positive values.
    key = jax.random.PRNGKey(0)
    losses = jax.random.uniform(key, (num,), jnp.float32, minval=0.5, maxval=3.0)

    out = automatic_weighted_loss(losses, params)
    out = jax.block_until_ready(out)

    ref = _reference(losses, params)
    assert jnp.allclose(out, ref, rtol=1e-5, atol=1e-5), (out, ref)

    # Gradient check (params is learnable in the PyTorch module).
    g_kernel = jax.grad(lambda p: automatic_weighted_loss(losses, p))(params)
    g_ref = jax.grad(lambda p: _reference(losses, p))(params)
    assert jnp.allclose(g_kernel, g_ref, rtol=1e-5, atol=1e-5), (g_kernel, g_ref)

    print("KERNEL_OK")
</pallas_src>

<mosaic_0001>
module attributes {stable_mosaic.version = 11 : i64} {
  func.func @_awl_kernel(%arg0: memref<1x2xf32, #tpu.memory_space<vmem>>, %arg1: memref<1x2xf32, #tpu.memory_space<vmem>>, %arg2: memref<1x1xf32, #tpu.memory_space<smem>>) attributes {dimension_semantics = [], scalar_prefetch = 0 : i64, scratch_operands = 0 : i64, tpu.core_type = #tpu.core_type<tc>} {
    %c0 = arith.constant 0 : index
    %c0_0 = arith.constant 0 : index
    %0 = vector.load %arg0[%c0, %c0_0] : memref<1x2xf32, #tpu.memory_space<vmem>>, vector<1x2xf32>
    %c0_1 = arith.constant 0 : index
    %c0_2 = arith.constant 0 : index
    %1 = vector.load %arg1[%c0_1, %c0_2] : memref<1x2xf32, #tpu.memory_space<vmem>>, vector<1x2xf32>
    %2 = arith.mulf %1, %1 : vector<1x2xf32>
    %cst = arith.constant 5.000000e-01 : f32
    %3 = vector.broadcast %cst : f32 to vector<1x2xf32>
    %4 = arith.mulf %3, %0 : vector<1x2xf32>
    %5 = tpu.reciprocal %2 : vector<1x2xf32> -> vector<1x2xf32>
    %6 = arith.mulf %4, %5 : vector<1x2xf32>
    %7 = math.log1p %2 : vector<1x2xf32>
    %8 = arith.addf %6, %7 : vector<1x2xf32>
    %9 = vector.shape_cast %8 : vector<1x2xf32> to vector<1x1x2xf32>
    %cst_3 = arith.constant dense<0.000000e+00> : vector<1xf32>
    %10 = vector.multi_reduction <add>, %9, %cst_3 [1, 2] : vector<1x1x2xf32> to vector<1xf32>
    %11 = vector.shape_cast %10 : vector<1xf32> to vector<1x1x1xf32>
    %12 = vector.extract %11[0, 0, 0] : f32 from vector<1x1x1xf32>
    %c0_4 = arith.constant 0 : index
    %c0_5 = arith.constant 0 : index
    %13 = memref.load %arg2[%c0_4, %c0_5] : memref<1x1xf32, #tpu.memory_space<smem>>
    memref.store %12, %arg2[%c0_4, %c0_5] : memref<1x1xf32, #tpu.memory_space<smem>>
    return
  }
}

</mosaic_0001>

<llo_original>
// kernel: automatic_weighted_loss.1
$region0: #{automatic_weighted_loss.1}
  #allocation0 [shape = 'u32[]', space=smem, size = 0x4, offset = 0x4, fixed_abs, tag = 'smem constant byte address 0x4 - core index']
  #allocation1 [shape = 'u32[144,128]{1,0:T(1,128)}', space=vmem, size = 0x12000, scoped, tag = 'internal scratch']
  %s0 = inlined_call_operand.vmem [shape: f32[1,2], index: 0, kind: input, shape index: {}]
  %s1 = inlined_call_operand.vmem [shape: f32[1,2], index: 1, kind: input, shape index: {}]
  %s2 = inlined_call_operand.hbm [shape: f32[1,1], index: 2, kind: output, shape index: {}]
  %s3 = sld [smem:[#allocation0]]
  $region18: #{automatic_weighted_loss.1} parent=0
    _
  %s5 = ssub.s32 1, %s3
  %s6 = scalar_select 0, %s5, %s3
  $region1: #{automatic_weighted_loss.1} parent=0
    #allocation2 [shape = 'u8[512]{0}', space=smem, size = 0x200, scoped, tag = 'output window, operand 0, single buffered']
    #allocation3 [shape = 's32[1]{0}', space=sflag, size = 0x4, scoped, tag = 'scoped memory for automatic_weighted_loss.1']
    %7 = vsyncpa [#allocation3], 0
    // Predicated region
    $region2: #{automatic_weighted_loss.1} parent=1 // pred_check
      _
    $region3: #{automatic_weighted_loss.1} parent=1 // pred_check_branch
      %9 = sbr.rel (0) target = $region5
    $region4: #{automatic_weighted_loss.1} parent=1 // pred_region
      _
    $region5: #{automatic_weighted_loss.1} parent=1 // pred_fallthru
      _
    // Predicated region
    $region6: #{automatic_weighted_loss.1} parent=1 // pred_check
      _
    $region7: #{automatic_weighted_loss.1} parent=1 // pred_check_branch
      %11 = sbr.rel (0) target = $region9
    $region8: #{automatic_weighted_loss.1} parent=1 // pred_region
      _
    $region9: #{automatic_weighted_loss.1} parent=1 // pred_fallthru
      _
    %v12 = vld [vmem:[%s0] sm:$0x1]
    %v13 = vld [vmem:[%s1] sm:$0x1]
    %v14 = vmul.f32 %v13, %v13
    %v15 = vmul.f32 %v12, 0.5
    %v16 = vrcp.pop %v14
    %v17 = vmul.f32 %v15, %v16
    %v18 = vadd.f32 %v14, 1.0
    %v19 = vlog2.pop %v18
    %v20 = vmul.f32 %v19, 0.6931472
    %v21 = vmul.f32 -0.5, %v14
    %v22 = vadd.f32 %v21, 1.0
    %v23 = vmul.f32 %v22, %v14
    %v24 = vand.u32 2147483647, %v14
    %vm25 = vcmp.lt.f32.partialorder %v24, 0.0004427343
    %v26 = vsel %vm25, %v23, %v20
    %v27 = vadd.f32 %v17, %v26
    %vm28 = vcmask 8192
    %v29 = vsel %vm28, %v27, 0.0
    %30 = vadd.xlane.f32.xlu0 %v29
    %v31 = vpop.xlane.xlu0 %30
    %v32 = vrot.slane %v31, 4
    %v33 = vadd.f32 %v31, %v32
    %v34 = vrot.slane %v33, 2
    %v35 = vadd.f32 %v33, %v34
    %v36 = vrot.slane %v35, 1
    %v37 = vadd.f32 %v35, %v36
    %s38 = vtos %v37
    %s39 = scalar_lea.smem [#allocation2], 0
    %40 = sst [smem:[%s39]] %s38
    // Predicated region
    $region10: #{automatic_weighted_loss.1} parent=1 // pred_check
      _
    $region11: #{automatic_weighted_loss.1} parent=1 // pred_check_branch
      %42 = sbr.rel (0) target = $region13
    $region12: #{automatic_weighted_loss.1} parent=1 // pred_region
      %s44 = ssub.s32 16, 16
      %45 = vsyncadd [#allocation3], %s44
      %48 = dma.smem_to_hbm [#allocation2], 16, %s2, [#allocation3]
    $region13: #{automatic_weighted_loss.1} parent=1 // pred_fallthru
      _
    // Predicated region
    $region14: #{automatic_weighted_loss.1} parent=1 // pred_check
      _
    $region15: #{automatic_weighted_loss.1} parent=1 // pred_check_branch
      %50 = sbr.rel (0) target = $region17
    $region16: #{automatic_weighted_loss.1} parent=1 // pred_region
      %51 = dma.done [#allocation3], 16
    $region17: #{automatic_weighted_loss.1} parent=1 // pred_fallthru
      _
    %52 = sfence
    %53 = vsyncpa [#allocation3], 1

</llo_original>
